<compile_context>
chip_gen: v5e
topology: v5e:2x2
jax: 0.10.0
libtpu: 0.0.40
codegen_flags: <defaults>
</compile_context>

<pallas_src>
import jax
import jax.numpy as jnp
from jax.experimental import pallas as pl
from jax.experimental.pallas import tpu as pltpu


def _round_up(x: int, m: int) -> int:
    return (x + m - 1) // m * m


def _make_kernel(apply_dropout: bool, last: bool):
    """Fused (dropout) -> matmul -> bias -> (relu) kernel body."""

    if apply_dropout:
        def kernel(x_ref, m_ref, w_ref, b_ref, o_ref):
            # Mask already carries the 1/(1-p) scale; multiply in native dtype.
            x = x_ref[...] * m_ref[...]
            y = jnp.dot(x, w_ref[...], preferred_element_type=jnp.float32)
            y = y + b_ref[...].astype(jnp.float32)
            if not last:
                y = jnp.maximum(y, 0.0)
            o_ref[...] = y.astype(o_ref.dtype)
    else:
        def kernel(x_ref, w_ref, b_ref, o_ref):
            y = jnp.dot(x_ref[...], w_ref[...], preferred_element_type=jnp.float32)
            y = y + b_ref[...].astype(jnp.float32)
            if not last:
                y = jnp.maximum(y, 0.0)
            o_ref[...] = y.astype(o_ref.dtype)

    return kernel


def prepare_params(weight, bias, *, lane: int = 128):
    """One-time parameter prep: transpose + zero-pad to lane-dense shapes.

    weight: (nclass, nfeat) -- nn.Linear.weight layout
    bias:   (nclass,)
    Returns (w_t_pad (Kp, Np), b_pad (1, Np)); cache and reuse across calls.
    """
    nclass, nfeat = weight.shape
    kp = _round_up(nfeat, lane)
    np_ = _round_up(nclass, lane)
    w_t_pad = jnp.zeros((kp, np_), weight.dtype).at[:nfeat, :nclass].set(weight.T)
    b_pad = jnp.zeros((1, np_), bias.dtype).at[0, :nclass].set(bias)
    return w_t_pad, b_pad


def _choose_tile_rows(b: int, kp: int, np_: int, in_bytes: int,
                      max_rows: int = 512,
                      budget_bytes: int = 24 * 1024 * 1024) -> int:
    """Pick a batch tile that fits comfortably in VMEM (double-buffered)."""
    tm = min(max_rows, _round_up(b, 8))
    tm = _round_up(tm, 8)
    while tm > 8:
        need = 2 * tm * kp * in_bytes        # x double buffer
        need += 2 * tm * kp * in_bytes       # (worst case) mask double buffer
        need += kp * np_ * in_bytes          # resident W^T
        need += np_ * in_bytes               # bias
        need += 2 * tm * np_ * 4             # output double buffer (<= f32)
        if need <= budget_bytes:
            break
        tm //= 2
        tm = _round_up(tm, 8)
    return max(tm, 8)


def mlp_forward(x, w_t_pad, b_pad, nclass, *, dropout=0.5, training=False,
                last=False, rng_key=None, max_tile_rows=512):
    """Pallas equivalent of MLP.forward.

    x:        (B, nfeat)
    w_t_pad:  (Kp, Np)  -- from prepare_params (W^T, zero-padded)
    b_pad:    (1, Np)
    nclass:   true output width (output is sliced back to it)
    """
    b, nfeat = x.shape
    kp, np_ = w_t_pad.shape
    dtype = x.dtype
    in_bytes = jnp.dtype(dtype).itemsize

    apply_dropout = bool(training) and float(dropout) > 0.0

    tm = _choose_tile_rows(b, kp, np_, in_bytes, max_rows=max_tile_rows)
    bp = _round_up(b, tm)

    # Zero-pad x (and mask) to (Bp, Kp); padded rows/cols contribute nothing.
    x_pad = jnp.zeros((bp, kp), dtype).at[:b, :nfeat].set(x)

    inputs = [x_pad]
    in_specs = [pl.BlockSpec((tm, kp), lambda i: (i, 0))]

    if apply_dropout:
        if rng_key is None:
            rng_key = jax.random.PRNGKey(0)
        keep = jax.random.bernoulli(rng_key, 1.0 - float(dropout), shape=x.shape)
        scale = keep.astype(dtype) * jnp.asarray(1.0 / (1.0 - float(dropout)), dtype)
        scale_pad = jnp.zeros((bp, kp), dtype).at[:b, :nfeat].set(scale)
        inputs.append(scale_pad)
        in_specs.append(pl.BlockSpec((tm, kp), lambda i: (i, 0)))

    # Weight / bias stay resident across batch tiles (constant index_map).
    inputs += [w_t_pad, b_pad]
    in_specs += [
        pl.BlockSpec((kp, np_), lambda i: (0, 0)),
        pl.BlockSpec((1, np_), lambda i: (0, 0)),
    ]

    # Explicit VMEM limit (safe for v7x's 64 MiB physical VMEM).
    need = (4 * tm * kp + kp * np_ + np_) * in_bytes + 2 * tm * np_ * 4
    vmem_limit = int(min(48 * 1024 * 1024, max(2 * need, 4 * 1024 * 1024)))

    kernel = _make_kernel(apply_dropout, bool(last))

    out_pad = pl.pallas_call(
        kernel,
        out_shape=jax.ShapeDtypeStruct((bp, np_), dtype),
        grid=(bp // tm,),
        in_specs=in_specs,
        out_specs=pl.BlockSpec((tm, np_), lambda i: (i, 0)),
        compiler_params=pltpu.CompilerParams(
            dimension_semantics=("parallel",),
            vmem_limit_bytes=vmem_limit),
    )(*inputs)

    return out_pad[:b, :nclass]


if __name__ == "__main__":
    # Small shapes consistent with the module: MLP(nfeat=32, nclass=8, dropout=0.5)
    batch, nfeat, nclass = 8, 32, 8
    dropout_p = 0.5

    key = jax.random.PRNGKey(0)
    kx, kw, kb, kd = jax.random.split(key, 4)

    x = jax.random.normal(kx, (batch, nfeat), dtype=jnp.float32)
    weight = jax.random.normal(kw, (nclass, nfeat), dtype=jnp.float32) * 0.1
    bias = jax.random.normal(kb, (nclass,), dtype=jnp.float32) * 0.1

    # One-time parameter prep (transpose + lane padding), reused across calls.
    w_t_pad, b_pad = prepare_params(weight, bias)

    # ---- Eval mode: dropout is identity, not-last => ReLU applied ----------
    out = mlp_forward(x, w_t_pad, b_pad, nclass, dropout=dropout_p,
                      training=False, last=False)
    out = jax.block_until_ready(out)

    ref = jnp.maximum(
        jnp.dot(x, weight.T, precision=jax.lax.Precision.HIGHEST) + bias, 0.0)
    assert out.shape == (batch, nclass)
    assert jnp.allclose(out, ref, atol=1e-4, rtol=1e-4), "eval-mode mismatch"

    # ---- Training mode: dropout mask applied inside the kernel -------------
    out_tr = mlp_forward(x, w_t_pad, b_pad, nclass, dropout=dropout_p,
                         training=True, last=False, rng_key=kd)
    out_tr = jax.block_until_ready(out_tr)

    keep = jax.random.bernoulli(kd, 1.0 - dropout_p, shape=x.shape)
    x_drop = x * keep.astype(x.dtype) * (1.0 / (1.0 - dropout_p))
    ref_tr = jnp.maximum(
        jnp.dot(x_drop, weight.T, precision=jax.lax.Precision.HIGHEST) + bias, 0.0)
    assert out_tr.shape == (batch, nclass)
    assert jnp.allclose(out_tr, ref_tr, atol=1e-4, rtol=1e-4), "train-mode mismatch"

    print("KERNEL_OK")
</pallas_src>

<mosaic_0001>
module attributes {stable_mosaic.version = 11 : i64} {
  func.func @kernel(%arg0: i32, %arg1: memref<8x128xf32, #tpu.memory_space<vmem>>, %arg2: memref<128x128xf32, #tpu.memory_space<vmem>>, %arg3: memref<1x128xf32, #tpu.memory_space<vmem>>, %arg4: memref<8x128xf32, #tpu.memory_space<vmem>>) attributes {dimension_semantics = [#tpu.dimension_semantics<parallel>], iteration_bounds = array<i64: 1>, scalar_prefetch = 0 : i64, scratch_operands = 0 : i64, tpu.core_type = #tpu.core_type<tc>, window_params = [{transform_indices = @transform_0, window_bounds = array<i64: 8, 128>}, {pipeline_mode = #tpu.pipeline_mode<synchronous>, transform_indices = @transform_1, window_bounds = array<i64: 128, 128>}, {pipeline_mode = #tpu.pipeline_mode<synchronous>, transform_indices = @transform_2, window_bounds = array<i64: 1, 128>}, {transform_indices = @transform_3, window_bounds = array<i64: 8, 128>}]} {
    %c0 = arith.constant 0 : index
    %c0_0 = arith.constant 0 : index
    %0 = vector.load %arg1[%c0, %c0_0] : memref<8x128xf32, #tpu.memory_space<vmem>>, vector<8x128xf32>
    %c0_1 = arith.constant 0 : index
    %c0_2 = arith.constant 0 : index
    %1 = vector.load %arg2[%c0_1, %c0_2] : memref<128x128xf32, #tpu.memory_space<vmem>>, vector<128x128xf32>
    %cst = arith.constant dense<0.000000e+00> : vector<8x128xf32>
    %2 = tpu.matmul %0, %1, %cst {dimension_numbers = #tpu.dot_dimension_numbers<[1], [0], [0], [1], [0, 0, 1, 1], [], []>} : vector<8x128xf32>, vector<128x128xf32>, vector<8x128xf32> -> vector<8x128xf32>
    %c0_3 = arith.constant 0 : index
    %c0_4 = arith.constant 0 : index
    %3 = vector.load %arg3[%c0_3, %c0_4] : memref<1x128xf32, #tpu.memory_space<vmem>>, vector<1x128xf32>
    %4 = vector.broadcast %3 : vector<1x128xf32> to vector<8x128xf32>
    %5 = arith.addf %2, %4 : vector<8x128xf32>
    %cst_5 = arith.constant 0.000000e+00 : f32
    %6 = vector.broadcast %cst_5 : f32 to vector<8x128xf32>
    %7 = arith.maximumf %5, %6 : vector<8x128xf32>
    %c0_6 = arith.constant 0 : index
    %c0_7 = arith.constant 0 : index
    %8 = vector.load %arg4[%c0_6, %c0_7] : memref<8x128xf32, #tpu.memory_space<vmem>>, vector<8x128xf32>
    tpu.vector_store %arg4[%c0_6, %c0_7], %7 {strides = array<i32>} : memref<8x128xf32, #tpu.memory_space<vmem>>, vector<8x128xf32>,
    return
  }
  func.func @transform_0(%arg0: i32) -> (i32, i32) {
    %c0_i32 = arith.constant 0 : i32
    %c0_i32_0 = arith.constant 0 : i32
    return %arg0, %c0_i32 : i32, i32
  }
  func.func @transform_1(%arg0: i32) -> (i32, i32) {
    %c0_i32 = arith.constant 0 : i32
    %c0_i32_0 = arith.constant 0 : i32
    %c0_i32_1 = arith.constant 0 : i32
    return %c0_i32, %c0_i32_0 : i32, i32
  }
  func.func @transform_2(%arg0: i32) -> (i32, i32) {
    %c0_i32 = arith.constant 0 : i32
    %c0_i32_0 = arith.constant 0 : i32
    %c0_i32_1 = arith.constant 0 : i32
    return %c0_i32, %c0_i32_0 : i32, i32
  }
  func.func @transform_3(%arg0: i32) -> (i32, i32) {
    %c0_i32 = arith.constant 0 : i32
    %c0_i32_0 = arith.constant 0 : i32
    return %arg0, %c0_i32 : i32, i32
  }
}

</mosaic_0001>

<llo_original>
// kernel: tpu_custom_call.1
$region0: #{tpu_custom_call.1}
  #allocation0 [shape = 'u32[]', space=smem, size = 0x4, offset = 0x4, fixed_abs, tag = 'smem constant byte address 0x4 - core index']
  #allocation1 [shape = 'u32[72,128]{1,0:T(1,128)}', space=vmem, size = 0x9000, scoped, tag = 'internal scratch']
  %s0 = inlined_call_operand.hbm [shape: f32[8,128], index: 0, kind: input, shape index: {}]
  %s1 = inlined_call_operand.hbm [shape: f32[128,128], index: 1, kind: input, shape index: {}]
  %s2 = inlined_call_operand.vmem [shape: f32[1,128], index: 2, kind: input, shape index: {}]
  %s3 = inlined_call_operand.hbm [shape: f32[8,128], index: 3, kind: output, shape index: {}]
  %s4 = sld [smem:[#allocation0]]
  $region30: #{tpu_custom_call.1} parent=0
    _
  %s6 = ssub.s32 1, %s4
  %s7 = scalar_select 0, %s6, %s4
  $region1: #{tpu_custom_call.1} parent=0
    #allocation2 [shape = 'u8[4096]{0}', space=vmem, size = 0x1000, scoped, tag = 'input window, operand 0, single buffered']
    #allocation3 [shape = 's32[1]{0}', space=sflag, size = 0x4, scoped, tag = 'scoped memory for tpu_custom_call.1']
    #allocation4 [shape = 's32[1]{0}', space=sflag, size = 0x4, scoped, tag = 'scoped memory for tpu_custom_call.1']
    #allocation5 [shape = 'u8[65536]{0}', space=vmem, size = 0x10000, scoped, tag = 'input window, operand 1, single buffered']
    #allocation6 [shape = 's32[1]{0}', space=sflag, size = 0x4, scoped, tag = 'scoped memory for tpu_custom_call.1']
    #allocation7 [shape = 'u8[4096]{0}', space=vmem, size = 0x1000, scoped, tag = 'output window, operand 0, single buffered']
    %8 = vsyncpa [#allocation3], 0
    %9 = vsyncpa [#allocation6], 0
    %10 = vsyncpa [#allocation4], 0
    // Predicated region
    $region2: #{tpu_custom_call.1} parent=1 // pred_check
      _
    $region3: #{tpu_custom_call.1} parent=1 // pred_check_branch
      %12 = sbr.rel (0) target = $region5
    $region4: #{tpu_custom_call.1} parent=1 // pred_region
      %14 = vsyncadd [#allocation3], 0
      %s16 = sshll.u32 %s0, 4
      %s17 = int_to_ptr.hbm [resolvable:$true] %s16
      %s18 = sshll.u32 [#allocation2], 4
      %s19 = int_to_ptr.vmem [resolvable:$true] %s18
      %21 = dma.hbm_to_vmem [thread:$0]  %s17, 128, %s19, [#allocation3]
    $region5: #{tpu_custom_call.1} parent=1 // pred_fallthru
      _
    // Predicated region
    $region6: #{tpu_custom_call.1} parent=1 // pred_check
      _
    $region7: #{tpu_custom_call.1} parent=1 // pred_check_branch
      %23 = sbr.rel (0) target = $region9
    $region8: #{tpu_custom_call.1} parent=1 // pred_region
      %25 = vsyncadd [#allocation6], 0
      %s26 = sshll.u32 %s1, 4
      %s27 = int_to_ptr.hbm [resolvable:$true] %s26
      %s28 = sshll.u32 [#allocation5], 4
      %s29 = int_to_ptr.vmem [resolvable:$true] %s28
      %34 = dma.hbm_to_vmem [thread:$0]  %s27, 2048, %s29, [#allocation6], 128, 128, 8
    $region9: #{tpu_custom_call.1} parent=1 // pred_fallthru
      _
    // Predicated region
    $region10: #{tpu_custom_call.1} parent=1 // pred_check
      _
    $region11: #{tpu_custom_call.1} parent=1 // pred_check_branch
      %36 = sbr.rel (0) target = $region13
    $region12: #{tpu_custom_call.1} parent=1 // pred_region
      _
    $region13: #{tpu_custom_call.1} parent=1 // pred_fallthru
      _
    // Predicated region
    $region14: #{tpu_custom_call.1} parent=1 // pred_check
      _
    $region15: #{tpu_custom_call.1} parent=1 // pred_check_branch
      %38 = sbr.rel (0) target = $region17
    $region16: #{tpu_custom_call.1} parent=1 // pred_region
      %40 = dma.done [#allocation3], 128
    $region17: #{tpu_custom_call.1} parent=1 // pred_fallthru
      _
    // Predicated region
    $region18: #{tpu_custom_call.1} parent=1 // pred_check
      _
    $region19: #{tpu_custom_call.1} parent=1 // pred_check_branch
      %42 = sbr.rel (0) target = $region21
    $region20: #{tpu_custom_call.1} parent=1 // pred_region
      %44 = dma.done [#allocation6], 2048
    $region21: #{tpu_custom_call.1} parent=1 // pred_fallthru
      _
    %v45 = vld [vmem:[#allocation2] sm:$0xff]
    %v46 = vld [vmem:[#allocation5] sm:$0xff]
    %v47 = vld [vmem:[#allocation5 + $0x8] sm:$0xff]
    %v48 = vld [vmem:[#allocation5 + $0x10] sm:$0xff]
    %v49 = vld [vmem:[#allocation5 + $0x18] sm:$0xff]
    %v50 = vld [vmem:[#allocation5 + $0x20] sm:$0xff]
    %v51 = vld [vmem:[#allocation5 + $0x28] sm:$0xff]
    %v52 = vld [vmem:[#allocation5 + $0x30] sm:$0xff]
    %v53 = vld [vmem:[#allocation5 + $0x38] sm:$0xff]
    %v54 = vld [vmem:[#allocation5 + $0x40] sm:$0xff]
    %v55 = vld [vmem:[#allocation5 + $0x48] sm:$0xff]
    %v56 = vld [vmem:[#allocation5 + $0x50] sm:$0xff]
    %v57 = vld [vmem:[#allocation5 + $0x58] sm:$0xff]
    %v58 = vld [vmem:[#allocation5 + $0x60] sm:$0xff]
    %v59 = vld [vmem:[#allocation5 + $0x68] sm:$0xff]
    %v60 = vld [vmem:[#allocation5 + $0x70] sm:$0xff]
    %v61 = vld [vmem:[#allocation5 + $0x78] sm:$0xff]
    %v62 = vld [vmem:[%s2] sm:$0x1]
    %v64 = vperm.slane %v62, 0
    %66 = vmatpush.msra.mxu0 %v61
    %67 = vmatpush.msra.mxu0 %v60
    %68 = vmatpush.msra.mxu0 %v59
    %69 = vmatpush.msra.mxu0 %v58
    %70 = vmatpush.msra.mxu0 %v57
    %71 = vmatpush.msra.mxu0 %v56
    %72 = vmatpush.msra.mxu0 %v55
    %73 = vmatpush.msra.mxu0 %v54
    %74 = vmatpush.msra.mxu0 %v53
    %75 = vmatpush.msra.mxu0 %v52
    %76 = vmatpush.msra.mxu0 %v51
    %77 = vmatpush.msra.mxu0 %v50
    %78 = vmatpush.msra.mxu0 %v49
    %79 = vmatpush.msra.mxu0 %v48
    %80 = vmatpush.msra.mxu0 %v47
    %81 = vmatpush.msra.mxu0 %v46
    %82 = vmatmul.f32.gmra.mxu0 %v45
    %v83 = vpop.f32.mrf.mxu0
    %v84 = vadd.f32 %v64, %v83
    %85 = vdwg.mxu0
    %v86 = vmax.f32 %v84, 0.0
    %87 = vst [vmem:[#allocation7] sm:$0xff] %v86
    // Predicated region
    $region22: #{tpu_custom_call.1} parent=1 // pred_check
      _
    $region23: #{tpu_custom_call.1} parent=1 // pred_check_branch
      %89 = sbr.rel (0) target = $region25
    $region24: #{tpu_custom_call.1} parent=1 // pred_region
      %91 = vsyncadd [#allocation4], 0
      %s93 = sshll.u32 [#allocation7], 4
      %s94 = int_to_ptr.vmem [resolvable:$true] %s93
      %s95 = sshll.u32 %s3, 4
      %s96 = int_to_ptr.hbm [resolvable:$true] %s95
      %98 = dma.vmem_to_hbm [thread:$0]  %s94, 128, %s96, [#allocation4]
    $region25: #{tpu_custom_call.1} parent=1 // pred_fallthru
      _
    // Predicated region
    $region26: #{tpu_custom_call.1} parent=1 // pred_check
      _
    $region27: #{tpu_custom_call.1} parent=1 // pred_check_branch
      %100 = sbr.rel (0) target = $region29
    $region28: #{tpu_custom_call.1} parent=1 // pred_region
      %102 = dma.done [#allocation4], 128
    $region29: #{tpu_custom_call.1} parent=1 // pred_fallthru
      _
    %103 = vsyncpa [#allocation3], 1
    %104 = vsyncpa [#allocation6], 1
    %105 = vsyncpa [#allocation4], 1

</llo_original>
